<compile_context>
chip_gen: v7x
topology: tpu7x:2x2x1
jax: 0.10.0
libtpu: 0.0.40
codegen_flags: <defaults>
</compile_context>

<pallas_src>
import jax
import jax.numpy as jnp
from jax.experimental import pallas as pl
from jax.experimental.pallas import tpu as pltpu

D = 10  # feature dim from the reference script


def custom_model_kernel(xt_ref, w2_ref, ot_ref):
    xt = xt_ref[...]   # (D, TL): feature-major tile, batch on the lane axis
    w2 = w2_ref[...]   # (D, D): torch Linear weight, used untransposed

    # layer 2, transposed form: (x @ W2^T)^T = W2 @ x^T   -> (D, TL)
    z = jnp.dot(w2, xt, preferred_element_type=jnp.float32)

    # softmax over the feature axis (dim=1 of the original layout) == the D
    # sublane rows here (XLU cross-sublane reduction; lanes stay dense).
    z_max = jnp.max(z, axis=0, keepdims=True)
    e = jnp.exp(z - z_max)
    denom = jnp.sum(e, axis=0, keepdims=True)
    # Exact divide: the previous approx reciprocal violated sum-to-1 within
    # the test tolerance; the kernel is memory-bound so this costs nothing.
    ot_ref[...] = (e / denom).astype(ot_ref.dtype)


def custom_model_forward(x, w1, w2, *, block_l=32768):
    """softmax(x @ w2.T, axis=1), computed feature-major / lane-dense.

    The tanh(x @ w1.T) branch never reaches the module output, so the dead
    branch is eliminated here (w1 is not passed to pallas_call at all).
    """
    del w1  # intentionally unused (dead branch in the PyTorch forward)

    n, d = x.shape
    assert w2.shape == (d, d)

    # Layout plumbing: present the problem feature-major so the batch axis
    # (the big one) sits on the 128-wide lane dimension.
    x_t = x.T  # (d, n)

    # Lane tile: a multiple of 128 (dense, unmasked stores + aligned DMA), or
    # the full batch when it is small.  Prefer >= 2 grid steps so the
    # "parallel" axis can be sharded across both TensorCores on v7x.
    block_l = max(128, (block_l // 128) * 128)
    if n > block_l:
        tl = block_l
    elif n >= 256 and n % 256 == 0:
        tl = n // 2          # 2 grid steps, tl still a multiple of 128
    else:
        tl = n               # single full-extent block
    grid = (pl.cdiv(n, tl),)

    cost = pl.CostEstimate(
        flops=2 * n * d * d,
        transcendentals=n * d,
        bytes_accessed=4 * (2 * n * d + d * d),
    )

    out_t = pl.pallas_call(
        custom_model_kernel,
        out_shape=jax.ShapeDtypeStruct((d, n), jnp.float32),
        grid_spec=pl.GridSpec(
            grid=grid,
            in_specs=[
                pl.BlockSpec((d, tl), lambda i: (0, i)),  # x.T: tiled along lanes
                pl.BlockSpec((d, d), lambda i: (0, 0)),   # W2: tiny, resident
            ],
            out_specs=pl.BlockSpec((d, tl), lambda i: (0, i)),
        ),
        compiler_params=pltpu.CompilerParams(
            # Batch columns are independent -> parallel axis (2x on v7x dual-TC).
            dimension_semantics=("parallel",),
            # Explicit scoped-VMEM budget: lane-dense tiles are tiny
            # (~2 MiB/buffer at tl=32768), 32 MiB is safe on v5e/v6e/v7x.
            vmem_limit_bytes=32 * 1024 * 1024,
        ),
        cost_estimate=cost,
    )(x_t, w2)

    # Back to the module's (N, D) output layout.
    return out_t.T


def reference_forward(x, w2):
    z = x @ w2.T
    z = z - jnp.max(z, axis=1, keepdims=True)
    e = jnp.exp(z)
    return e / jnp.sum(e, axis=1, keepdims=True)


if __name__ == "__main__":
    key = jax.random.PRNGKey(0)
    k_x, k_w1, k_w2 = jax.random.split(key, 3)

    n = 256  # small batch; wrapper picks tl=128 -> a 2-step tiled grid
    x = jax.random.normal(k_x, (n, D), dtype=jnp.float32)
    # PyTorch-Linear-like uniform(-1/sqrt(D), 1/sqrt(D)) init, bias=False.
    bound = 1.0 / jnp.sqrt(jnp.float32(D))
    w1 = jax.random.uniform(k_w1, (D, D), dtype=jnp.float32, minval=-bound, maxval=bound)
    w2 = jax.random.uniform(k_w2, (D, D), dtype=jnp.float32, minval=-bound, maxval=bound)

    out = custom_model_forward(x, w1, w2)
    out = jax.block_until_ready(out)

    ref = reference_forward(x, w2)
    assert out.shape == (n, D)
    assert jnp.allclose(out, ref, atol=1e-5, rtol=1e-5), "mismatch vs reference"
    assert jnp.allclose(jnp.sum(out, axis=1), 1.0, atol=1e-5), "rows must sum to 1"

    print("KERNEL_OK")
</pallas_src>

<mosaic_0001>
module attributes {stable_mosaic.version = 11 : i64} {
  func.func @custom_model_kernel(%arg0: i32, %arg1: memref<10x128xf32, #tpu.memory_space<vmem>>, %arg2: memref<10x10xf32, #tpu.memory_space<vmem>>, %arg3: memref<10x128xf32, #tpu.memory_space<vmem>>) attributes {dimension_semantics = [#tpu.dimension_semantics<parallel>], iteration_bounds = array<i64: 2>, scalar_prefetch = 0 : i64, scratch_operands = 0 : i64, tpu.core_type = #tpu.core_type<tc>, window_params = [{transform_indices = @transform_0, window_bounds = array<i64: 10, 128>}, {pipeline_mode = #tpu.pipeline_mode<synchronous>, transform_indices = @transform_1, window_bounds = array<i64: 10, 10>}, {transform_indices = @transform_2, window_bounds = array<i64: 10, 128>}]} {
    %c0 = arith.constant 0 : index
    %c0_0 = arith.constant 0 : index
    %0 = vector.load %arg1[%c0, %c0_0] : memref<10x128xf32, #tpu.memory_space<vmem>>, vector<10x128xf32>
    %c0_1 = arith.constant 0 : index
    %c0_2 = arith.constant 0 : index
    %1 = vector.load %arg2[%c0_1, %c0_2] : memref<10x10xf32, #tpu.memory_space<vmem>>, vector<10x10xf32>
    %cst = arith.constant dense<0.000000e+00> : vector<10x128xf32>
    %2 = tpu.matmul %1, %0, %cst {dimension_numbers = #tpu.dot_dimension_numbers<[1], [0], [0], [1], [0, 0, 1, 1], [], []>} : vector<10x10xf32>, vector<10x128xf32>, vector<10x128xf32> -> vector<10x128xf32>
    %cst_3 = arith.constant dense<0xFF800000> : vector<128xf32>
    %3 = vector.multi_reduction <maximumf>, %2, %cst_3 [0] : vector<10x128xf32> to vector<128xf32>
    %4 = vector.shape_cast %3 : vector<128xf32> to vector<1x128xf32>
    %5 = vector.broadcast %4 : vector<1x128xf32> to vector<10x128xf32>
    %6 = arith.subf %2, %5 : vector<10x128xf32>
    %7 = math.exp %6 : vector<10x128xf32>
    %cst_4 = arith.constant dense<0.000000e+00> : vector<128xf32>
    %8 = vector.multi_reduction <add>, %7, %cst_4 [0] : vector<10x128xf32> to vector<128xf32>
    %9 = vector.shape_cast %8 : vector<128xf32> to vector<1x128xf32>
    %10 = vector.broadcast %9 : vector<1x128xf32> to vector<10x128xf32>
    %11 = arith.divf %7, %10 : vector<10x128xf32>
    %c0_5 = arith.constant 0 : index
    %c0_6 = arith.constant 0 : index
    %12 = vector.load %arg3[%c0_5, %c0_6] : memref<10x128xf32, #tpu.memory_space<vmem>>, vector<10x128xf32>
    tpu.vector_store %arg3[%c0_5, %c0_6], %11 {strides = array<i32>} : memref<10x128xf32, #tpu.memory_space<vmem>>, vector<10x128xf32>,
    return
  }
  func.func @transform_0(%arg0: i32) -> (i32, i32) {
    %c0_i32 = arith.constant 0 : i32
    %c0_i32_0 = arith.constant 0 : i32
    return %c0_i32, %arg0 : i32, i32
  }
  func.func @transform_1(%arg0: i32) -> (i32, i32) {
    %c0_i32 = arith.constant 0 : i32
    %c0_i32_0 = arith.constant 0 : i32
    %c0_i32_1 = arith.constant 0 : i32
    return %c0_i32, %c0_i32_0 : i32, i32
  }
  func.func @transform_2(%arg0: i32) -> (i32, i32) {
    %c0_i32 = arith.constant 0 : i32
    %c0_i32_0 = arith.constant 0 : i32
    return %c0_i32, %arg0 : i32, i32
  }
}

</mosaic_0001>

<llo_original>
// kernel: tpu_custom_call.1
$region0: #{tpu_custom_call.1}
  #allocation0 [shape = 'u32[]', space=smem, size = 0x4, offset = 0x4, fixed_abs, tag = 'smem constant byte address 0x4 - core index']
  #allocation1 [shape = 'u32[144,128]{1,0:T(1,128)}', space=vmem, size = 0x12000, scoped, tag = 'internal scratch']
  %s0 = inlined_call_operand.hbm [shape: f32[10,256], index: 0, kind: input, shape index: {}]
  %s1 = inlined_call_operand.hbm [shape: f32[10,10], index: 1, kind: input, shape index: {}]
  %s2 = inlined_call_operand.hbm [shape: f32[10,256], index: 2, kind: output, shape index: {}]
  %s3 = sld [smem:[#allocation0]]
  $region49: #{tpu_custom_call.1} parent=0
    _
  %s5 = ssub.s32 1, %s3
  %s6 = scalar_select 0, %s5, %s3
  $region1: #{tpu_custom_call.1} parent=0
    #allocation2 [shape = 'u8[16384]{0}', space=vmem, size = 0x4000, scoped, tag = 'input window, operand 0']
    #allocation3 [shape = 's32[2]{0}', space=sflag, size = 0x8, scoped, tag = 'scoped memory for tpu_custom_call.1']
    #allocation4 [shape = 's32[2]{0}', space=sflag, size = 0x8, scoped, tag = 'scoped memory for tpu_custom_call.1']
    #allocation5 [shape = 'u8[8192]{0}', space=vmem, size = 0x2000, scoped, tag = 'input window, operand 1, single buffered']
    #allocation6 [shape = 's32[1]{0}', space=sflag, size = 0x4, scoped, tag = 'scoped memory for tpu_custom_call.1']
    #allocation7 [shape = 'u8[16384]{0}', space=vmem, size = 0x4000, scoped, tag = 'output window, operand 0']
    %7 = vsyncpa [#allocation3], 0
    %s8 = scalar_lea.sflag [#allocation3], 1
    %9 = vsyncpa %s8, 0
    %10 = vsyncpa [#allocation6], 0
    %11 = vsyncpa [#allocation4], 0
    %s12 = scalar_lea.sflag [#allocation4], 1
    %13 = vsyncpa %s12, 0
    loop: start=0, step=1, limit=4
    $region2: #{tpu_custom_call.1} parent=1 // loop_pre_header
      _
    $region3: #{tpu_custom_call.1} parent=1 // loop_header
      %s15 = sphi 0, %s19
      %p16 = scmp.ge.s32.totalorder %s15, 4
      %s25 = sphi 0, %s27
      %s28 = sphi 0, %s25
      %s29 = sphi 0, %s28
      %s45 = sphi 0, %s29
      %s49 = sphi 0, %s49
      %s51 = sphi 0, %s49
      %s52 = sphi 0, %s51
      %s66 = sphi 0, %s52
      %s72 = sphi 0, %s74
      %s75 = sphi 0, %s72
      %s76 = sphi 0, %s75
      %s92 = sphi 0, %s76
    $region4: #{tpu_custom_call.1} parent=1 // loop_header_branch
      %18 = sbr.rel (%p16) target = $region8
    $region5: #{tpu_custom_call.1} parent=1 // loop_body
      %s20 = ssub.s32 %s15, 1
      %s21 = ssub.s32 %s15, 2
      %s22 = sadd.s32 %s15, 1
      %s23 = ssub.s32 %s15, %s22
      %p24 = scmp.eq.s32.totalorder %s23, 0
      %s26 = sadd.s32 %s25, 1
      %s27 = scalar_select %p24, %s25, %s26
      %p30 = pneg %p24
      %p31 = scmp.eq.s32.totalorder %s15, 1
      %p32 = por %p30, %p31
      %p33 = scmp.ne.s32.totalorder %s25, %s28
      %p34 = scmp.eq.s32.totalorder %s15, 0
      %p35 = por %p33, %p34
      %p36 = scmp.ne.s32.totalorder %s25, %s28
      %p37 = scmp.eq.s32.totalorder %s20, 1
      %p38 = por %p36, %p37
      %p39 = scmp.ne.s32.totalorder %s28, %s29
      %p40 = scmp.eq.s32.totalorder %s20, 0
      %p41 = por %p39, %p40
      %p42 = scmp.ne.s32.totalorder %s28, %s29
      %p43 = scmp.eq.s32.totalorder %s21, 1
      %p44 = por %p42, %p43
      %p46 = scmp.ne.s32.totalorder %s29, %s45
      %p47 = scmp.eq.s32.totalorder %s21, 0
      %p48 = por %p46, %p47
      %s50 = sadd.s32 %s49, 1
      %p53 = scmp.eq.s32.totalorder %s15, 1
      %p54 = scmp.ne.s32.totalorder %s49, %s51
      %p55 = scmp.eq.s32.totalorder %s15, 0
      %p56 = por %p54, %p55
      %p57 = scmp.ne.s32.totalorder %s49, %s51
      %p58 = scmp.eq.s32.totalorder %s20, 1
      %p59 = por %p57, %p58
      %p60 = scmp.ne.s32.totalorder %s51, %s52
      %p61 = scmp.eq.s32.totalorder %s20, 0
      %p62 = por %p60, %p61
      %p63 = scmp.ne.s32.totalorder %s51, %s52
      %p64 = scmp.eq.s32.totalorder %s21, 1
      %p65 = por %p63, %p64
      %p67 = scmp.ne.s32.totalorder %s52, %s66
      %p68 = scmp.eq.s32.totalorder %s21, 0
      %p69 = por %p67, %p68
      %s70 = ssub.s32 %s15, %s22
      %p71 = scmp.eq.s32.totalorder %s70, 0
      %s73 = sadd.s32 %s72, 1
      %s74 = scalar_select %p71, %s72, %s73
      %p77 = pneg %p71
      %p78 = scmp.eq.s32.totalorder %s15, 1
      %p79 = por %p77, %p78
      %p80 = scmp.ne.s32.totalorder %s72, %s75
      %p81 = scmp.eq.s32.totalorder %s15, 0
      %p82 = por %p80, %p81
      %p83 = scmp.ne.s32.totalorder %s72, %s75
      %p84 = scmp.eq.s32.totalorder %s20, 1
      %p85 = por %p83, %p84
      %p86 = scmp.ne.s32.totalorder %s75, %s76
      %p87 = scmp.eq.s32.totalorder %s20, 0
      %p88 = por %p86, %p87
      %p89 = scmp.ne.s32.totalorder %s75, %s76
      %p90 = scmp.eq.s32.totalorder %s21, 1
      %p91 = por %p89, %p90
      %p93 = scmp.ne.s32.totalorder %s76, %s92
      %p94 = scmp.eq.s32.totalorder %s21, 0
      %p95 = por %p93, %p94
      %p96 = scmp.le.s32.totalorder 1, %s15
      %p97 = scmp.lt.s32.totalorder %s15, 3
      %p98 = pnand %p96, %p97
      %p99 = pneg %p98
      // Predicated region
      $region9: #{tpu_custom_call.1} parent=5 // pred_check
        _
      $region10: #{tpu_custom_call.1} parent=5 // pred_check_branch
        %101 = sbr.rel (%p98) target = $region12
      $region11: #{tpu_custom_call.1} parent=5 // pred_region
        %s102 = ssub.s32 %s15, 1
        // Predicated region
        $region13: #{tpu_custom_call.1} parent=11 // pred_check
          %p103 = pneg %p62
        $region14: #{tpu_custom_call.1} parent=11 // pred_check_branch
          %105 = sbr.rel (%p103) target = $region16
        $region15: #{tpu_custom_call.1} parent=11 // pred_region
          %s107 = ssub.s32 256, 256
          %108 = vsyncadd [#allocation6], %s107
          %s109 = sshll.u32 [#allocation5], 4
          %s110 = int_to_ptr.vmem [resolvable:$true] %s109
          %115 = dma.hbm_to_vmem [thread:$0]  %s1, 256, %s110, [#allocation6], 128, 128, 8
        $region16: #{tpu_custom_call.1} parent=11 // pred_fallthru
          _
      $region12: #{tpu_custom_call.1} parent=5 // pred_fallthru
        _
      %p116 = scmp.lt.s32.totalorder %s15, 2
      // Predicated region
      $region17: #{tpu_custom_call.1} parent=5 // pred_check
        %p117 = pneg %p116
      $region18: #{tpu_custom_call.1} parent=5 // pred_check_branch
        %119 = sbr.rel (%p117) target = $region20
      $region19: #{tpu_custom_call.1} parent=5 // pred_region
        // Predicated region
        $region21: #{tpu_custom_call.1} parent=19 // pred_check
          %p120 = pneg %p35
        $region22: #{tpu_custom_call.1} parent=19 // pred_check_branch
          %122 = sbr.rel (%p120) target = $region24
        $region23: #{tpu_custom_call.1} parent=19 // pred_region
          %s123 = sand.u32 %s25, 1
          %s124 = scalar_lea.sflag [#allocation3], %s123
          %s125 = sand.u32 %s25, 1
          %s126 = smul.addr %s125, 16
          %s127 = scalar_lea.vmem [#allocation2], %s126
          %s129 = ssub.s32 256, 256
          %130 = vsyncadd %s124, %s129
          %s131 = smul.addr %s15, 128
          %s132 = scalar_lea.hbm %s0, %s131
          %s133 = sshll.u32 %s127, 4
          %s134 = int_to_ptr.vmem [resolvable:$true] %s133
          %139 = dma.hbm_to_vmem [thread:$0]  %s132, 256, %s134, %s124, 256, 128, 8
        $region24: #{tpu_custom_call.1} parent=19 // pred_fallthru
          _
      $region20: #{tpu_custom_call.1} parent=5 // pred_fallthru
        _
      %p140 = scmp.le.s32.totalorder 1, %s15
      %p141 = scmp.lt.s32.totalorder %s15, 3
      %p142 = pnand %p140, %p141
      %p143 = pneg %p142
      // Predicated region
      $region25: #{tpu_custom_call.1} parent=5 // pred_check
        _
      $region26: #{tpu_custom_call.1} parent=5 // pred_check_branch
        %145 = sbr.rel (%p142) target = $region28
      $region27: #{tpu_custom_call.1} parent=5 // pred_region
        %s146 = ssub.s32 %s15, 1
        %s147 = sand.u32 %s28, 1
        %s148 = scalar_lea.sflag [#allocation3], %s147
        %s149 = sand.u32 %s28, 1
        %s150 = smul.addr %s149, 16
        %s151 = scalar_lea.vmem [#allocation2], %s150
        // Predicated region
        $region29: #{tpu_custom_call.1} parent=27 // pred_check
          %p152 = pneg %p41
        $region30: #{tpu_custom_call.1} parent=27 // pred_check_branch
          %154 = sbr.rel (%p152) target = $region32
        $region31: #{tpu_custom_call.1} parent=27 // pred_region
          %155 = dma.done %s148, 256
        $region32: #{tpu_custom_call.1} parent=27 // pred_fallthru
          _
        // Predicated region
        $region33: #{tpu_custom_call.1} parent=27 // pred_check
          %p156 = pneg %p62
        $region34: #{tpu_custom_call.1} parent=27 // pred_check_branch
          %158 = sbr.rel (%p156) target = $region36
        $region35: #{tpu_custom_call.1} parent=27 // pred_region
          %159 = dma.done [#allocation6], 256
        $region36: #{tpu_custom_call.1} parent=27 // pred_fallthru
          _
        %s160 = sand.u32 %s28, 1
        %s161 = scalar_lea.sflag [#allocation3], %s160
        %s162 = sand.u32 %s28, 1
        %s163 = smul.addr %s162, 16
        %s164 = scalar_lea.vmem [#allocation2], %s163
        %p165 = pneg %p41
        %p166 = pneg %p38
        %p167 = pneg %p62
        %p168 = pneg %p59
        %p169 = pneg %p88
        %p170 = pneg %p85
        %s171 = sand.u32 %s75, 1
        %s172 = scalar_lea.sflag [#allocation4], %s171
        %s173 = sand.u32 %s75, 1
        %s174 = smul.addr %s173, 16
        %s175 = scalar_lea.vmem [#allocation7], %s174
        %v176 = vld [vmem:[%s151] sm:$0xff]
        %v177 = vld [vmem:[%s151 + $0x8] sm:$0x3]
        %v178 = vld [vmem:[#allocation5] sm:$0xff]
        %v179 = vld [vmem:[#allocation5 + $0x8] sm:$0x3]
        %vm180 = vcmask 80896
        %v182 = vsel %vm180, %v178, 0
        %v185 = vsel %vm180, %v179, 0
        %vm187 = vcmask 1041408
        %v189 = vsel %vm187, %v177, 0
        %191 = vmatprep.subr.mxu0 0.0
        %192 = vmatpush1.msra.mxu0 %v176
        %193 = vmatprep.subr.mxu0 0.0
        %194 = vmatpush1.msra.mxu0 %v189
        %195 = vmatprep.subr.mxu0 0.0
        %196 = vmatpush1.msra.mxu0 0.0
        %197 = vmatprep.subr.mxu0 0.0
        %198 = vmatpush1.msra.mxu0 0.0
        %199 = vmatprep.subr.mxu0 0.0
        %200 = vmatpush1.msra.mxu0 0.0
        %201 = vmatprep.subr.mxu0 0.0
        %202 = vmatpush1.msra.mxu0 0.0
        %203 = vmatprep.subr.mxu0 0.0
        %204 = vmatpush1.msra.mxu0 0.0
        %205 = vmatprep.subr.mxu0 0.0
        %206 = vmatpush1.msra.mxu0 0.0
        %207 = vmatprep.subr.mxu0 0.0
        %208 = vmatpush1.msra.mxu0 0.0
        %209 = vmatprep.subr.mxu0 0.0
        %210 = vmatpush1.msra.mxu0 0.0
        %211 = vmatprep.subr.mxu0 0.0
        %212 = vmatpush1.msra.mxu0 0.0
        %213 = vmatprep.subr.mxu0 0.0
        %214 = vmatpush1.msra.mxu0 0.0
        %215 = vmatprep.subr.mxu0 0.0
        %216 = vmatpush1.msra.mxu0 0.0
        %217 = vmatprep.subr.mxu0 0.0
        %218 = vmatpush1.msra.mxu0 0.0
        %219 = vmatprep.subr.mxu0 0.0
        %220 = vmatpush1.msra.mxu0 0.0
        %221 = vmatprep.subr.mxu0 0.0
        %222 = vmatpush1.msra.mxu0 0.0
        %223 = vmatprep.subr.mxu0 0.0
        %224 = vmatpush1.msra.mxu0 0.0
        %225 = vmatprep.subr.mxu0 0.0
        %226 = vmatpush1.msra.mxu0 0.0
        %227 = vmatprep.subr.mxu0 0.0
        %228 = vmatpush1.msra.mxu0 0.0
        %229 = vmatprep.subr.mxu0 0.0
        %230 = vmatpush1.msra.mxu0 0.0
        %231 = vmatprep.subr.mxu0 0.0
        %232 = vmatpush1.msra.mxu0 0.0
        %233 = vmatprep.subr.mxu0 0.0
        %234 = vmatpush1.msra.mxu0 0.0
        %235 = vmatprep.subr.mxu0 0.0
        %236 = vmatpush1.msra.mxu0 0.0
        %237 = vmatprep.subr.mxu0 0.0
        %238 = vmatpush1.msra.mxu0 0.0
        %239 = vmatprep.subr.mxu0 0.0
        %240 = vmatpush1.msra.mxu0 0.0
        %241 = vmatprep.subr.mxu0 0.0
        %242 = vmatpush1.msra.mxu0 0.0
        %243 = vmatprep.subr.mxu0 0.0
        %244 = vmatpush1.msra.mxu0 0.0
        %245 = vmatprep.subr.mxu0 0.0
        %246 = vmatpush1.msra.mxu0 0.0
        %247 = vmatprep.subr.mxu0 0.0
        %248 = vmatpush1.msra.mxu0 0.0
        %249 = vmatprep.subr.mxu0 0.0
        %250 = vmatpush1.msra.mxu0 0.0
        %251 = vmatprep.subr.mxu0 0.0
        %252 = vmatpush1.msra.mxu0 0.0
        %253 = vmatprep.subr.mxu0 0.0
        %254 = vmatpush1.msra.mxu0 0.0
        %255 = vmatprep.mubr.f32.mxu0 0.0
        %256 = vmatmul.mubr.f32.gmra.mrb[0].mxu0 %v182
        %v257 = vpop.f32.mrb[0].mxu0
        %v258 = vadd.f32 0.0, %v257
        %v259 = vpop.f32.mrb[0].mxu0
        %260 = vmatprep.mubr.f32.mxu0 0.0
        %261 = vmatmul.mubr.f32.gmra.mrb[0].mxu0 %v185
        %v262 = vpop.f32.mrb[0].mxu0
        %v263 = vadd.f32 0.0, %v262
        %v264 = vpop.f32.mrb[0].mxu0
        %265 = vdwg.mxu0
        %v266 = vsel %vm187, %v263, -inf
        %v267 = vmax.f32 %v258, %v266
        %v268 = vrot.slane %v267, 4
        %v269 = vmax.f32 %v267, %v268
        %v270 = vrot.slane %v269, 2
        %v271 = vmax.f32 %v269, %v270
        %v272 = vrot.slane %v271, 1
        %v273 = vmax.f32 %v271, %v272
        %v274 = vsub.f32 %v258, %v273
        %v275 = vsub.f32 %v263, %v273
        %v276 = vmul.f32 %v274, 1.442695
        %v277 = vpow.pop %v276
        %v278 = vmul.f32 %v275, 1.442695
        %v279 = vpow.pop %v278
        %v280 = vsel %vm187, %v279, 0.0
        %v281 = vadd.f32 %v277, %v280
        %v282 = vrot.slane %v281, 4
        %v283 = vadd.f32 %v281, %v282
        %v284 = vrot.slane %v283, 2
        %v285 = vadd.f32 %v283, %v284
        %v286 = vrot.slane %v285, 1
        %v287 = vadd.f32 %v285, %v286
        %v288 = vrcp.pop %v287
        %v289 = vmul.f32 %v277, %v288
        %v290 = vmul.f32 %v279, %v288
        %291 = vst [vmem:[%s175] sm:$0xff] %v289
        %292 = vst [vmem:[%s175 + $0x8] sm:$0x3] %v290
        %s293 = sand.u32 %s75, 1
        %s294 = scalar_lea.sflag [#allocation4], %s293
        %s295 = sand.u32 %s75, 1
        %s296 = smul.addr %s295, 16
        %s297 = scalar_lea.vmem [#allocation7], %s296
        // Predicated region
        $region37: #{tpu_custom_call.1} parent=27 // pred_check
          %p298 = pneg %p85
        $region38: #{tpu_custom_call.1} parent=27 // pred_check_branch
          %300 = sbr.rel (%p298) target = $region40
        $region39: #{tpu_custom_call.1} parent=27 // pred_region
          %s302 = ssub.s32 256, 256
          %303 = vsyncadd %s294, %s302
          %s304 = smul.addr %s20, 128
          %s305 = scalar_lea.hbm %s2, %s304
          %s306 = sshll.u32 %s297, 4
          %s307 = int_to_ptr.vmem [resolvable:$true] %s306
          %312 = dma.vmem_to_hbm [thread:$0]  %s307, 256, %s305, %s294, 128, 256, 8
        $region40: #{tpu_custom_call.1} parent=27 // pred_fallthru
          _
      $region28: #{tpu_custom_call.1} parent=5 // pred_fallthru
        _
      %p313 = scmp.le.s32.totalorder 2, %s15
      // Predicated region
      $region41: #{tpu_custom_call.1} parent=5 // pred_check
        %p314 = pneg %p313
      $region42: #{tpu_custom_call.1} parent=5 // pred_check_branch
        %316 = sbr.rel (%p314) target = $region44
      $region43: #{tpu_custom_call.1} parent=5 // pred_region
        %s317 = ssub.s32 %s15, 2
        // Predicated region
        $region45: #{tpu_custom_call.1} parent=43 // pred_check
          %p318 = pneg %p91
        $region46: #{tpu_custom_call.1} parent=43 // pred_check_branch
          %320 = sbr.rel (%p318) target = $region48
        $region47: #{tpu_custom_call.1} parent=43 // pred_region
          %s321 = sand.u32 %s76, 1
          %s322 = scalar_lea.sflag [#allocation4], %s321
          %s323 = sand.u32 %s76, 1
          %s324 = smul.addr %s323, 16
          %s325 = scalar_lea.vmem [#allocation7], %s324
          %326 = dma.done %s322, 256
        $region48: #{tpu_custom_call.1} parent=43 // pred_fallthru
          _
      $region44: #{tpu_custom_call.1} parent=5 // pred_fallthru
        _
    $region6: #{tpu_custom_call.1} parent=1 // loop_footer
      %s19 = sadd.s32 1, %s15
    $region7: #{tpu_custom_call.1} parent=1 // loop_footer_branch
      %14 = sbr.rel target = $region3
    $region8: #{tpu_custom_call.1} parent=1 // loop_exit
      _
    %327 = vsyncpa [#allocation3], 1
    %s328 = scalar_lea.sflag [#allocation3], 1
    %329 = vsyncpa %s328, 1
    %330 = vsyncpa [#allocation6], 1
    %331 = vsyncpa [#allocation4], 1
    %s332 = scalar_lea.sflag [#allocation4], 1
    %333 = vsyncpa %s332, 1

</llo_original>
